<compile_context>
chip_gen: v7x
topology: tpu7x:2x2x1
jax: 0.10.0
libtpu: 0.0.40
codegen_flags: <defaults>
</compile_context>

<pallas_src>
import functools

import jax
import jax.numpy as jnp
from jax import lax
from jax.experimental import pallas as pl
from jax.experimental.pallas import tpu as pltpu

LAMBDA_VR = 0.1
LAMBDA_RV = 0.5
EPS = 1e-12


def _pal_kernel(x_rgb_ref, x_ir_ref, loss_ref, sim_ri_ref, sim_ir_ref,
                *, block_q, matmul_dtype, lambda_vr, lambda_rv):
    """One grid step: `block_q` query rows of one PAL instance.

    x_rgb_ref / x_ir_ref : (N, D)   full feature matrices of this instance
    loss_ref             : (1, 1)   partial loss of this row block
    sim_ri_ref/sim_ir_ref: (block_q, N) row blocks of the two sim outputs
    """
    n, _ = x_rgb_ref.shape
    qi = pl.program_id(1)
    row0 = pl.multiple_of(qi * block_q, block_q)

    x_rgb = x_rgb_ref[...].astype(jnp.float32)   # (N, D) keys / projection values
    x_ir = x_ir_ref[...].astype(jnp.float32)     # (N, D)

    # Key-side L2 normalization (needed in full by every gram matmul).
    # 1/(||x|| + eps) matches torch.norm(...)+1e-12 placement exactly.
    inv_nr = pl.reciprocal(
        jnp.sqrt(jnp.sum(x_rgb * x_rgb, axis=-1, keepdims=True)) + EPS)
    inv_ni = pl.reciprocal(
        jnp.sqrt(jnp.sum(x_ir * x_ir, axis=-1, keepdims=True)) + EPS)
    nr = x_rgb * inv_nr                          # normalize(x_rgb)
    ni = x_ir * inv_ni                           # normalize(x_ir)

    # Query row block (raw features); query-side norm is folded into a
    # post-matmul row scale instead of materializing another normalized copy.
    x_rgb_q = x_rgb_ref[pl.ds(row0, block_q), :].astype(jnp.float32)  # (TQ, D)
    x_ir_q = x_ir_ref[pl.ds(row0, block_q), :].astype(jnp.float32)    # (TQ, D)
    inv_nr_q = pl.reciprocal(
        jnp.sqrt(jnp.sum(x_rgb_q * x_rgb_q, axis=-1, keepdims=True)) + EPS)
    inv_ni_q = pl.reciprocal(
        jnp.sqrt(jnp.sum(x_ir_q * x_ir_q, axis=-1, keepdims=True)) + EPS)

    def cast(a):
        return a if matmul_dtype is None else a.astype(matmul_dtype)

    def mm_abt(a, b):
        # a @ b.T (contract last dims), f32 accumulation on the MXU.
        return lax.dot_general(cast(a), cast(b), (((1,), (1,)), ((), ())),
                               preferred_element_type=jnp.float32)

    def mm(a, b):
        return jnp.dot(cast(a), cast(b), preferred_element_type=jnp.float32)

    # --- Similarity logits for this row block (TQ, N). ---
    logits_ri = mm_abt(x_rgb_q, ni) * inv_nr_q   # normalize(x_rgb)[rows] @ ni.T
    logits_ir = mm_abt(x_ir_q, nr) * inv_ni_q    # normalize(x_ir)[rows]  @ nr.T
    logits_ii = mm_abt(x_ir_q, ni) * inv_ni_q    # normalize(x_ir)[rows]  @ ni.T

    def softmax(x):
        m = jnp.max(x, axis=-1, keepdims=True)
        e = jnp.exp(x - m)
        return e * pl.reciprocal(jnp.sum(e, axis=-1, keepdims=True))

    sim_ri = softmax(logits_ri)
    sim_ir = softmax(logits_ir)
    sim_ii = softmax(logits_ii)

    # Unmasked, lane-dense row-block stores (no concat copy, no wrapper slice).
    sim_ri_ref[...] = sim_ri.astype(sim_ri_ref.dtype)
    sim_ir_ref[...] = sim_ir.astype(sim_ir_ref.dtype)

    # --- Projections (TQ, N) @ (N, D) -> (TQ, D) on the MXU. ---
    x_rgbtoir = mm(sim_ri, x_ir)
    x_irtorgb = mm(sim_ir, x_rgb)
    x_irtoir = mm(sim_ii, x_ir)

    # Fused softmax + log-softmax for the KL target distributions:
    #   s = x - rowmax, Z = sum exp(s);  q = exp(s)/Z,  log q = s - log Z.
    # (Avoids a full-tensor log(q) and is exactly 0 where q underflows.)
    def softmax_and_log(x):
        s = x - jnp.max(x, axis=-1, keepdims=True)
        e = jnp.exp(s)
        z = jnp.sum(e, axis=-1, keepdims=True)
        return e * pl.reciprocal(z), s - jnp.log(z)

    def log_softmax(x):
        s = x - jnp.max(x, axis=-1, keepdims=True)
        return s - jnp.log(jnp.sum(jnp.exp(s), axis=-1, keepdims=True))

    q1, logq1 = softmax_and_log(x_rgb_q)     # softmax(x_rgb) rows
    logp1 = log_softmax(x_rgbtoir)
    q2, logq2 = softmax_and_log(x_irtorgb)   # softmax(x_irtorgb) rows
    logp2 = log_softmax(x_irtoir)

    # KLDivLoss(reduction='batchmean') == sum(q * (log q - log p)) / N
    # (N = full number of rows of the instance, not the block size).
    part = (lambda_vr * jnp.sum(q1 * (logq1 - logp1))
            + lambda_rv * jnp.sum(q2 * (logq2 - logp2))) * (1.0 / n)
    loss_ref[...] = jnp.reshape(part, (1, 1)).astype(loss_ref.dtype)


def prediction_alignment_loss_batched(x_rgb, x_ir, *, block_q=None,
                                      matmul_dtype=None):
    """Batched PAL: x_rgb, x_ir are (B, N, D).

    Returns (loss[B], sim_rgbtoir[B, N, N], sim_irtorgb[B, N, N]).
    `matmul_dtype=jnp.bfloat16` enables bf16 MXU operands (f32 accumulation).
    """
    b, n, d = x_rgb.shape
    if block_q is None:
        block_q = 128 if (n % 128 == 0) else n
    assert n % block_q == 0, "block_q must divide N"
    assert block_q == n or block_q % 8 == 0, "block_q must be a multiple of 8"
    nq = n // block_q

    kernel = functools.partial(
        _pal_kernel, block_q=block_q, matmul_dtype=matmul_dtype,
        lambda_vr=LAMBDA_VR, lambda_rv=LAMBDA_RV)

    # Advisory cost hint: 3 gram + 3 projection matmuls per instance.
    flops = int(b * 12 * n * n * d)
    transcendentals = int(b * (3 * n * n + 4 * n * d + 8 * n))
    bytes_accessed = int(4 * b * (2 * n * d + 2 * n * n + nq))

    loss_parts, sim_ri, sim_ir = pl.pallas_call(
        kernel,
        out_shape=(
            jax.ShapeDtypeStruct((b, nq, 1, 1), jnp.float32),  # per-block loss
            jax.ShapeDtypeStruct((b, n, n), jnp.float32),      # sim_rgbtoir
            jax.ShapeDtypeStruct((b, n, n), jnp.float32),      # sim_irtorgb
        ),
        grid=(b, nq),
        in_specs=[
            # Full (N, D) instance resident per step; block index is constant
            # across the row-block axis so Pallas skips the re-DMA.
            pl.BlockSpec((None, n, d), lambda bi, qi: (bi, 0, 0)),
            pl.BlockSpec((None, n, d), lambda bi, qi: (bi, 0, 0)),
        ],
        out_specs=(
            pl.BlockSpec((None, None, 1, 1), lambda bi, qi: (bi, qi, 0, 0)),
            pl.BlockSpec((None, block_q, n), lambda bi, qi: (bi, qi, 0)),
            pl.BlockSpec((None, block_q, n), lambda bi, qi: (bi, qi, 0)),
        ),
        compiler_params=pltpu.CompilerParams(
            # Every output block is written exactly once -> both axes parallel.
            dimension_semantics=("parallel", "parallel"),
            vmem_limit_bytes=64 * 1024 * 1024,
        ),
        cost_estimate=pl.CostEstimate(
            flops=flops,
            transcendentals=transcendentals,
            bytes_accessed=bytes_accessed,
        ),
    )(x_rgb, x_ir)

    losses = jnp.sum(loss_parts[:, :, 0, 0], axis=1)
    return losses, sim_ri, sim_ir


def prediction_alignment_loss(x_rgb, x_ir, *, block_q=None, matmul_dtype=None):
    """Single-instance API matching the PyTorch module: inputs are (N, D)."""
    loss, sim_ri, sim_ir = prediction_alignment_loss_batched(
        x_rgb[None], x_ir[None], block_q=block_q, matmul_dtype=matmul_dtype)
    return loss[0], sim_ri[0], sim_ir[0]


def _reference(x_rgb, x_ir):
    # Pure-JAX reference mirroring the PyTorch forward (full-precision matmuls).
    with jax.default_matmul_precision("highest"):
        def l2norm(x):
            return x / (jnp.linalg.norm(x, axis=-1, keepdims=True) + 1e-12)

        nr, ni = l2norm(x_rgb), l2norm(x_ir)
        sim_rgbtoir = jax.nn.softmax(nr @ ni.T, axis=1)
        sim_irtorgb = jax.nn.softmax(ni @ nr.T, axis=1)
        sim_irtoir = jax.nn.softmax(ni @ ni.T, axis=1)
        x_rgbtoir = sim_rgbtoir @ x_ir
        x_irtorgb = sim_irtorgb @ x_rgb
        x_irtoir = sim_irtoir @ x_ir
        x_rgb_s = jax.nn.softmax(x_rgb, axis=1)
        x_rgbtoir_ls = jax.nn.log_softmax(x_rgbtoir, axis=1)
        x_irtorgb_s = jax.nn.softmax(x_irtorgb, axis=1)
        x_irtoir_ls = jax.nn.log_softmax(x_irtoir, axis=1)
        n = x_rgb.shape[0]

        def kl(log_p, q):
            return jnp.sum(q * (jnp.log(q) - log_p)) / n

        loss = (LAMBDA_VR * kl(x_rgbtoir_ls, x_rgb_s)
                + LAMBDA_RV * kl(x_irtoir_ls, x_irtorgb_s))
    return loss, sim_rgbtoir, sim_irtorgb


if __name__ == "__main__":
    key = jax.random.PRNGKey(0)
    k1, k2, k3, k4 = jax.random.split(key, 4)

    # --- Case 1: tiny shapes (single row block per instance). ---
    B, N, D = 2, 8, 32
    x_rgb_b = jax.random.normal(k1, (B, N, D), dtype=jnp.float32)
    x_ir_b = jax.random.normal(k2, (B, N, D), dtype=jnp.float32)

    losses, s1, s2 = jax.jit(prediction_alignment_loss_batched)(x_rgb_b, x_ir_b)
    jax.block_until_ready((losses, s1, s2))
    for i in range(B):
        rl, r1, r2 = _reference(x_rgb_b[i], x_ir_b[i])
        assert jnp.allclose(losses[i], rl, atol=1e-5, rtol=1e-4)
        assert jnp.allclose(s1[i], r1, atol=1e-5, rtol=1e-4)
        assert jnp.allclose(s2[i], r2, atol=1e-5, rtol=1e-4)

    # Single-instance API (exactly the PyTorch module forward).
    loss, sim1, sim2 = jax.jit(prediction_alignment_loss)(x_rgb_b[0], x_ir_b[0])
    jax.block_until_ready((loss, sim1, sim2))
    rl, r1, r2 = _reference(x_rgb_b[0], x_ir_b[0])
    assert jnp.allclose(loss, rl, atol=1e-5, rtol=1e-4)
    assert jnp.allclose(sim1, r1, atol=1e-5, rtol=1e-4)
    assert jnp.allclose(sim2, r2, atol=1e-5, rtol=1e-4)

    # --- Case 2: shapes exercising the row tiling (2 row blocks / instance). ---
    B2, N2, D2 = 2, 256, 64
    x_rgb2 = jax.random.normal(k3, (B2, N2, D2), dtype=jnp.float32)
    x_ir2 = jax.random.normal(k4, (B2, N2, D2), dtype=jnp.float32)
    f_tiled = jax.jit(functools.partial(prediction_alignment_loss_batched,
                                        block_q=128))
    losses2, s1_2, s2_2 = f_tiled(x_rgb2, x_ir2)
    jax.block_until_ready((losses2, s1_2, s2_2))
    for i in range(B2):
        rl, r1, r2 = _reference(x_rgb2[i], x_ir2[i])
        assert jnp.allclose(losses2[i], rl, atol=1e-5, rtol=1e-4)
        assert jnp.allclose(s1_2[i], r1, atol=1e-5, rtol=1e-4)
        assert jnp.allclose(s2_2[i], r2, atol=1e-5, rtol=1e-4)

    # --- bf16 MXU operands (f32 accumulation): compute lever, loose parity. ---
    f_bf16 = jax.jit(functools.partial(prediction_alignment_loss_batched,
                                       block_q=128, matmul_dtype=jnp.bfloat16))
    losses_b, s1_b, s2_b = f_bf16(x_rgb2, x_ir2)
    jax.block_until_ready((losses_b, s1_b, s2_b))
    assert bool(jnp.all(jnp.isfinite(losses_b)))
    assert jnp.allclose(s1_b, s1_2, atol=5e-2, rtol=5e-2)
    assert jnp.allclose(s2_b, s2_2, atol=5e-2, rtol=5e-2)
    assert jnp.allclose(losses_b, losses2, atol=1e-1, rtol=1e-1)

    print("KERNEL_OK")
</pallas_src>

<mosaic_0001>
module attributes {stable_mosaic.version = 11 : i64} {
  func.func @_pal_kernel(%arg0: i32, %arg1: i32, %arg2: memref<1x8x32xf32, #tpu.memory_space<vmem>>, %arg3: memref<1x8x32xf32, #tpu.memory_space<vmem>>, %arg4: memref<1x1x1x1xf32, #tpu.memory_space<vmem>>, %arg5: memref<1x8x8xf32, #tpu.memory_space<vmem>>, %arg6: memref<1x8x8xf32, #tpu.memory_space<vmem>>) attributes {dimension_semantics = [#tpu.dimension_semantics<parallel>, #tpu.dimension_semantics<parallel>], iteration_bounds = array<i64: 2, 1>, scalar_prefetch = 0 : i64, scratch_operands = 0 : i64, tpu.core_type = #tpu.core_type<tc>, window_params = [{transform_indices = @transform_0, window_bounds = array<i64: 1, 8, 32>}, {transform_indices = @transform_1, window_bounds = array<i64: 1, 8, 32>}, {transform_indices = @transform_2, window_bounds = array<i64: 1, 1, 1, 1>}, {transform_indices = @transform_3, window_bounds = array<i64: 1, 8, 8>}, {transform_indices = @transform_4, window_bounds = array<i64: 1, 8, 8>}]} {
    %c8_i32 = arith.constant 8 : i32
    %0 = arith.muli %arg1, %c8_i32 : i32
    %1 = tpu.assume_multiple %0, 8 : i32
    %c0 = arith.constant 0 : index
    %c0_0 = arith.constant 0 : index
    %c0_1 = arith.constant 0 : index
    %2 = vector.load %arg2[%c0, %c0_0, %c0_1] : memref<1x8x32xf32, #tpu.memory_space<vmem>>, vector<1x8x32xf32>
    %3 = vector.shape_cast %2 : vector<1x8x32xf32> to vector<8x32xf32>
    %c0_2 = arith.constant 0 : index
    %c0_3 = arith.constant 0 : index
    %c0_4 = arith.constant 0 : index
    %4 = vector.load %arg3[%c0_2, %c0_3, %c0_4] : memref<1x8x32xf32, #tpu.memory_space<vmem>>, vector<1x8x32xf32>
    %5 = vector.shape_cast %4 : vector<1x8x32xf32> to vector<8x32xf32>
    %6 = arith.mulf %3, %3 : vector<8x32xf32>
    %cst = arith.constant dense<0.000000e+00> : vector<8xf32>
    %7 = vector.multi_reduction <add>, %6, %cst [1] : vector<8x32xf32> to vector<8xf32>
    %8 = vector.shape_cast %7 : vector<8xf32> to vector<8x1xf32>
    %9 = math.sqrt %8 : vector<8x1xf32>
    %cst_5 = arith.constant 9.99999996E-13 : f32
    %10 = vector.broadcast %cst_5 : f32 to vector<8x1xf32>
    %11 = arith.addf %9, %10 : vector<8x1xf32>
    %12 = tpu.reciprocal %11 : vector<8x1xf32> -> vector<8x1xf32>
    %13 = arith.mulf %5, %5 : vector<8x32xf32>
    %cst_6 = arith.constant dense<0.000000e+00> : vector<8xf32>
    %14 = vector.multi_reduction <add>, %13, %cst_6 [1] : vector<8x32xf32> to vector<8xf32>
    %15 = vector.shape_cast %14 : vector<8xf32> to vector<8x1xf32>
    %16 = math.sqrt %15 : vector<8x1xf32>
    %cst_7 = arith.constant 9.99999996E-13 : f32
    %17 = vector.broadcast %cst_7 : f32 to vector<8x1xf32>
    %18 = arith.addf %16, %17 : vector<8x1xf32>
    %19 = tpu.reciprocal %18 : vector<8x1xf32> -> vector<8x1xf32>
    %20 = vector.broadcast %12 : vector<8x1xf32> to vector<8x32xf32>
    %21 = arith.mulf %3, %20 : vector<8x32xf32>
    %22 = vector.broadcast %19 : vector<8x1xf32> to vector<8x32xf32>
    %23 = arith.mulf %5, %22 : vector<8x32xf32>
    %c0_8 = arith.constant 0 : index
    %24 = arith.index_cast %1 : i32 to index
    %c0_9 = arith.constant 0 : index
    %25 = vector.load %arg2[%c0_8, %24, %c0_9] : memref<1x8x32xf32, #tpu.memory_space<vmem>>, vector<1x8x32xf32>
    %26 = vector.shape_cast %25 : vector<1x8x32xf32> to vector<8x32xf32>
    %c0_10 = arith.constant 0 : index
    %27 = arith.index_cast %1 : i32 to index
    %c0_11 = arith.constant 0 : index
    %28 = vector.load %arg3[%c0_10, %27, %c0_11] : memref<1x8x32xf32, #tpu.memory_space<vmem>>, vector<1x8x32xf32>
    %29 = vector.shape_cast %28 : vector<1x8x32xf32> to vector<8x32xf32>
    %30 = arith.mulf %26, %26 : vector<8x32xf32>
    %cst_12 = arith.constant dense<0.000000e+00> : vector<8xf32>
    %31 = vector.multi_reduction <add>, %30, %cst_12 [1] : vector<8x32xf32> to vector<8xf32>
    %32 = vector.shape_cast %31 : vector<8xf32> to vector<8x1xf32>
    %33 = math.sqrt %32 : vector<8x1xf32>
    %cst_13 = arith.constant 9.99999996E-13 : f32
    %34 = vector.broadcast %cst_13 : f32 to vector<8x1xf32>
    %35 = arith.addf %33, %34 : vector<8x1xf32>
    %36 = tpu.reciprocal %35 : vector<8x1xf32> -> vector<8x1xf32>
    %37 = arith.mulf %29, %29 : vector<8x32xf32>
    %cst_14 = arith.constant dense<0.000000e+00> : vector<8xf32>
    %38 = vector.multi_reduction <add>, %37, %cst_14 [1] : vector<8x32xf32> to vector<8xf32>
    %39 = vector.shape_cast %38 : vector<8xf32> to vector<8x1xf32>
    %40 = math.sqrt %39 : vector<8x1xf32>
    %cst_15 = arith.constant 9.99999996E-13 : f32
    %41 = vector.broadcast %cst_15 : f32 to vector<8x1xf32>
    %42 = arith.addf %40, %41 : vector<8x1xf32>
    %43 = tpu.reciprocal %42 : vector<8x1xf32> -> vector<8x1xf32>
    %cst_16 = arith.constant dense<0.000000e+00> : vector<8x8xf32>
    %44 = tpu.matmul %26, %23, %cst_16 {dimension_numbers = #tpu.dot_dimension_numbers<[1], [1], [0], [0], [0, 0, 1, 0], [], []>} : vector<8x32xf32>, vector<8x32xf32>, vector<8x8xf32> -> vector<8x8xf32>
    %45 = vector.broadcast %36 : vector<8x1xf32> to vector<8x8xf32>
    %46 = arith.mulf %44, %45 : vector<8x8xf32>
    %cst_17 = arith.constant dense<0.000000e+00> : vector<8x8xf32>
    %47 = tpu.matmul %29, %21, %cst_17 {dimension_numbers = #tpu.dot_dimension_numbers<[1], [1], [0], [0], [0, 0, 1, 0], [], []>} : vector<8x32xf32>, vector<8x32xf32>, vector<8x8xf32> -> vector<8x8xf32>
    %48 = vector.broadcast %43 : vector<8x1xf32> to vector<8x8xf32>
    %49 = arith.mulf %47, %48 : vector<8x8xf32>
    %cst_18 = arith.constant dense<0.000000e+00> : vector<8x8xf32>
    %50 = tpu.matmul %29, %23, %cst_18 {dimension_numbers = #tpu.dot_dimension_numbers<[1], [1], [0], [0], [0, 0, 1, 0], [], []>} : vector<8x32xf32>, vector<8x32xf32>, vector<8x8xf32> -> vector<8x8xf32>
    %51 = vector.broadcast %43 : vector<8x1xf32> to vector<8x8xf32>
    %52 = arith.mulf %50, %51 : vector<8x8xf32>
    %cst_19 = arith.constant dense<0xFF800000> : vector<8xf32>
    %53 = vector.multi_reduction <maximumf>, %46, %cst_19 [1] : vector<8x8xf32> to vector<8xf32>
    %54 = vector.shape_cast %53 : vector<8xf32> to vector<8x1xf32>
    %55 = vector.broadcast %54 : vector<8x1xf32> to vector<8x8xf32>
    %56 = arith.subf %46, %55 : vector<8x8xf32>
    %57 = math.exp %56 : vector<8x8xf32>
    %cst_20 = arith.constant dense<0.000000e+00> : vector<8xf32>
    %58 = vector.multi_reduction <add>, %57, %cst_20 [1] : vector<8x8xf32> to vector<8xf32>
    %59 = vector.shape_cast %58 : vector<8xf32> to vector<8x1xf32>
    %60 = tpu.reciprocal %59 : vector<8x1xf32> -> vector<8x1xf32>
    %61 = vector.broadcast %60 : vector<8x1xf32> to vector<8x8xf32>
    %62 = arith.mulf %57, %61 : vector<8x8xf32>
    %cst_21 = arith.constant dense<0xFF800000> : vector<8xf32>
    %63 = vector.multi_reduction <maximumf>, %49, %cst_21 [1] : vector<8x8xf32> to vector<8xf32>
    %64 = vector.shape_cast %63 : vector<8xf32> to vector<8x1xf32>
    %65 = vector.broadcast %64 : vector<8x1xf32> to vector<8x8xf32>
    %66 = arith.subf %49, %65 : vector<8x8xf32>
    %67 = math.exp %66 : vector<8x8xf32>
    %cst_22 = arith.constant dense<0.000000e+00> : vector<8xf32>
    %68 = vector.multi_reduction <add>, %67, %cst_22 [1] : vector<8x8xf32> to vector<8xf32>
    %69 = vector.shape_cast %68 : vector<8xf32> to vector<8x1xf32>
    %70 = tpu.reciprocal %69 : vector<8x1xf32> -> vector<8x1xf32>
    %71 = vector.broadcast %70 : vector<8x1xf32> to vector<8x8xf32>
    %72 = arith.mulf %67, %71 : vector<8x8xf32>
    %cst_23 = arith.constant dense<0xFF800000> : vector<8xf32>
    %73 = vector.multi_reduction <maximumf>, %52, %cst_23 [1] : vector<8x8xf32> to vector<8xf32>
    %74 = vector.shape_cast %73 : vector<8xf32> to vector<8x1xf32>
    %75 = vector.broadcast %74 : vector<8x1xf32> to vector<8x8xf32>
    %76 = arith.subf %52, %75 : vector<8x8xf32>
    %77 = math.exp %76 : vector<8x8xf32>
    %cst_24 = arith.constant dense<0.000000e+00> : vector<8xf32>
    %78 = vector.multi_reduction <add>, %77, %cst_24 [1] : vector<8x8xf32> to vector<8xf32>
    %79 = vector.shape_cast %78 : vector<8xf32> to vector<8x1xf32>
    %80 = tpu.reciprocal %79 : vector<8x1xf32> -> vector<8x1xf32>
    %81 = vector.broadcast %80 : vector<8x1xf32> to vector<8x8xf32>
    %82 = arith.mulf %77, %81 : vector<8x8xf32>
    %c0_25 = arith.constant 0 : index
    %c0_26 = arith.constant 0 : index
    %c0_27 = arith.constant 0 : index
    %83 = vector.load %arg5[%c0_25, %c0_26, %c0_27] : memref<1x8x8xf32, #tpu.memory_space<vmem>>, vector<1x8x8xf32>
    %84 = vector.shape_cast %83 : vector<1x8x8xf32> to vector<8x8xf32>
    %85 = vector.shape_cast %62 : vector<8x8xf32> to vector<1x8x8xf32>
    tpu.vector_store %arg5[%c0_25, %c0_26, %c0_27], %85 {strides = array<i32>} : memref<1x8x8xf32, #tpu.memory_space<vmem>>, vector<1x8x8xf32>,
    %c0_28 = arith.constant 0 : index
    %c0_29 = arith.constant 0 : index
    %c0_30 = arith.constant 0 : index
    %86 = vector.load %arg6[%c0_28, %c0_29, %c0_30] : memref<1x8x8xf32, #tpu.memory_space<vmem>>, vector<1x8x8xf32>
    %87 = vector.shape_cast %86 : vector<1x8x8xf32> to vector<8x8xf32>
    %88 = vector.shape_cast %72 : vector<8x8xf32> to vector<1x8x8xf32>
    tpu.vector_store %arg6[%c0_28, %c0_29, %c0_30], %88 {strides = array<i32>} : memref<1x8x8xf32, #tpu.memory_space<vmem>>, vector<1x8x8xf32>,
    %cst_31 = arith.constant dense<0.000000e+00> : vector<8x32xf32>
    %89 = tpu.matmul %62, %5, %cst_31 {dimension_numbers = #tpu.dot_dimension_numbers<[1], [0], [0], [1], [0, 0, 1, 1], [], []>} : vector<8x8xf32>, vector<8x32xf32>, vector<8x32xf32> -> vector<8x32xf32>
    %cst_32 = arith.constant dense<0.000000e+00> : vector<8x32xf32>
    %90 = tpu.matmul %72, %3, %cst_32 {dimension_numbers = #tpu.dot_dimension_numbers<[1], [0], [0], [1], [0, 0, 1, 1], [], []>} : vector<8x8xf32>, vector<8x32xf32>, vector<8x32xf32> -> vector<8x32xf32>
    %cst_33 = arith.constant dense<0.000000e+00> : vector<8x32xf32>
    %91 = tpu.matmul %82, %5, %cst_33 {dimension_numbers = #tpu.dot_dimension_numbers<[1], [0], [0], [1], [0, 0, 1, 1], [], []>} : vector<8x8xf32>, vector<8x32xf32>, vector<8x32xf32> -> vector<8x32xf32>
    %cst_34 = arith.constant dense<0xFF800000> : vector<8xf32>
    %92 = vector.multi_reduction <maximumf>, %26, %cst_34 [1] : vector<8x32xf32> to vector<8xf32>
    %93 = vector.shape_cast %92 : vector<8xf32> to vector<8x1xf32>
    %94 = vector.broadcast %93 : vector<8x1xf32> to vector<8x32xf32>
    %95 = arith.subf %26, %94 : vector<8x32xf32>
    %96 = math.exp %95 : vector<8x32xf32>
    %cst_35 = arith.constant dense<0.000000e+00> : vector<8xf32>
    %97 = vector.multi_reduction <add>, %96, %cst_35 [1] : vector<8x32xf32> to vector<8xf32>
    %98 = vector.shape_cast %97 : vector<8xf32> to vector<8x1xf32>
    %99 = tpu.reciprocal %98 : vector<8x1xf32> -> vector<8x1xf32>
    %100 = vector.broadcast %99 : vector<8x1xf32> to vector<8x32xf32>
    %101 = arith.mulf %96, %100 : vector<8x32xf32>
    %102 = math.log %98 : vector<8x1xf32>
    %103 = vector.broadcast %102 : vector<8x1xf32> to vector<8x32xf32>
    %104 = arith.subf %95, %103 : vector<8x32xf32>
    %cst_36 = arith.constant dense<0xFF800000> : vector<8xf32>
    %105 = vector.multi_reduction <maximumf>, %89, %cst_36 [1] : vector<8x32xf32> to vector<8xf32>
    %106 = vector.shape_cast %105 : vector<8xf32> to vector<8x1xf32>
    %107 = vector.broadcast %106 : vector<8x1xf32> to vector<8x32xf32>
    %108 = arith.subf %89, %107 : vector<8x32xf32>
    %109 = math.exp %108 : vector<8x32xf32>
    %cst_37 = arith.constant dense<0.000000e+00> : vector<8xf32>
    %110 = vector.multi_reduction <add>, %109, %cst_37 [1] : vector<8x32xf32> to vector<8xf32>
    %111 = vector.shape_cast %110 : vector<8xf32> to vector<8x1xf32>
    %112 = math.log %111 : vector<8x1xf32>
    %113 = vector.broadcast %112 : vector<8x1xf32> to vector<8x32xf32>
    %114 = arith.subf %108, %113 : vector<8x32xf32>
    %cst_38 = arith.constant dense<0xFF800000> : vector<8xf32>
    %115 = vector.multi_reduction <maximumf>, %90, %cst_38 [1] : vector<8x32xf32> to vector<8xf32>
    %116 = vector.shape_cast %115 : vector<8xf32> to vector<8x1xf32>
    %117 = vector.broadcast %116 : vector<8x1xf32> to vector<8x32xf32>
    %118 = arith.subf %90, %117 : vector<8x32xf32>
    %119 = math.exp %118 : vector<8x32xf32>
    %cst_39 = arith.constant dense<0.000000e+00> : vector<8xf32>
    %120 = vector.multi_reduction <add>, %119, %cst_39 [1] : vector<8x32xf32> to vector<8xf32>
    %121 = vector.shape_cast %120 : vector<8xf32> to vector<8x1xf32>
    %122 = tpu.reciprocal %121 : vector<8x1xf32> -> vector<8x1xf32>
    %123 = vector.broadcast %122 : vector<8x1xf32> to vector<8x32xf32>
    %124 = arith.mulf %119, %123 : vector<8x32xf32>
    %125 = math.log %121 : vector<8x1xf32>
    %126 = vector.broadcast %125 : vector<8x1xf32> to vector<8x32xf32>
    %127 = arith.subf %118, %126 : vector<8x32xf32>
    %cst_40 = arith.constant dense<0xFF800000> : vector<8xf32>
    %128 = vector.multi_reduction <maximumf>, %91, %cst_40 [1] : vector<8x32xf32> to vector<8xf32>
    %129 = vector.shape_cast %128 : vector<8xf32> to vector<8x1xf32>
    %130 = vector.broadcast %129 : vector<8x1xf32> to vector<8x32xf32>
    %131 = arith.subf %91, %130 : vector<8x32xf32>
    %132 = math.exp %131 : vector<8x32xf32>
    %cst_41 = arith.constant dense<0.000000e+00> : vector<8xf32>
    %133 = vector.multi_reduction <add>, %132, %cst_41 [1] : vector<8x32xf32> to vector<8xf32>
    %134 = vector.shape_cast %133 : vector<8xf32> to vector<8x1xf32>
    %135 = math.log %134 : vector<8x1xf32>
    %136 = vector.broadcast %135 : vector<8x1xf32> to vector<8x32xf32>
    %137 = arith.subf %131, %136 : vector<8x32xf32>
    %138 = arith.subf %104, %114 : vector<8x32xf32>
    %139 = arith.mulf %101, %138 : vector<8x32xf32>
    %140 = vector.shape_cast %139 : vector<8x32xf32> to vector<1x8x32xf32>
    %cst_42 = arith.constant dense<0.000000e+00> : vector<1xf32>
    %141 = vector.multi_reduction <add>, %140, %cst_42 [1, 2] : vector<1x8x32xf32> to vector<1xf32>
    %142 = vector.shape_cast %141 : vector<1xf32> to vector<1x1x1xf32>
    %143 = vector.extract %142[0, 0, 0] : f32 from vector<1x1x1xf32>
    %cst_43 = arith.constant 1.000000e-01 : f32
    %144 = arith.mulf %cst_43, %143 : f32
    %145 = arith.subf %127, %137 : vector<8x32xf32>
    %146 = arith.mulf %124, %145 : vector<8x32xf32>
    %147 = vector.shape_cast %146 : vector<8x32xf32> to vector<1x8x32xf32>
    %cst_44 = arith.constant dense<0.000000e+00> : vector<1xf32>
    %148 = vector.multi_reduction <add>, %147, %cst_44 [1, 2] : vector<1x8x32xf32> to vector<1xf32>
    %149 = vector.shape_cast %148 : vector<1xf32> to vector<1x1x1xf32>
    %150 = vector.extract %149[0, 0, 0] : f32 from vector<1x1x1xf32>
    %cst_45 = arith.constant 5.000000e-01 : f32
    %151 = arith.mulf %cst_45, %150 : f32
    %152 = arith.addf %144, %151 : f32
    %cst_46 = arith.constant 1.250000e-01 : f32
    %153 = arith.mulf %152, %cst_46 : f32
    %154 = vector.broadcast %153 : f32 to vector<1x1xf32>
    %c0_47 = arith.constant 0 : index
    %c0_48 = arith.constant 0 : index
    %c0_49 = arith.constant 0 : index
    %c0_50 = arith.constant 0 : index
    %155 = vector.load %arg4[%c0_47, %c0_48, %c0_49, %c0_50] : memref<1x1x1x1xf32, #tpu.memory_space<vmem>>, vector<1x1x1x1xf32>
    %156 = vector.shape_cast %155 : vector<1x1x1x1xf32> to vector<1x1xf32>
    %157 = vector.shape_cast %154 : vector<1x1xf32> to vector<1x1x1x1xf32>
    tpu.vector_store %arg4[%c0_47, %c0_48, %c0_49, %c0_50], %157 {strides = array<i32>} : memref<1x1x1x1xf32, #tpu.memory_space<vmem>>, vector<1x1x1x1xf32>,
    return
  }
  func.func @transform_0(%arg0: i32, %arg1: i32) -> (i32, i32, i32) {
    %c0_i32 = arith.constant 0 : i32
    %c0_i32_0 = arith.constant 0 : i32
    %c0_i32_1 = arith.constant 0 : i32
    return %arg0, %c0_i32, %c0_i32_0 : i32, i32, i32
  }
  func.func @transform_1(%arg0: i32, %arg1: i32) -> (i32, i32, i32) {
    %c0_i32 = arith.constant 0 : i32
    %c0_i32_0 = arith.constant 0 : i32
    %c0_i32_1 = arith.constant 0 : i32
    return %arg0, %c0_i32, %c0_i32_0 : i32, i32, i32
  }
  func.func @transform_2(%arg0: i32, %arg1: i32) -> (i32, i32, i32, i32) {
    %c0_i32 = arith.constant 0 : i32
    %c0_i32_0 = arith.constant 0 : i32
    %c0_i32_1 = arith.constant 0 : i32
    return %arg0, %arg1, %c0_i32, %c0_i32_0 : i32, i32, i32, i32
  }
  func.func @transform_3(%arg0: i32, %arg1: i32) -> (i32, i32, i32) {
    %c0_i32 = arith.constant 0 : i32
    %c0_i32_0 = arith.constant 0 : i32
    return %arg0, %arg1, %c0_i32 : i32, i32, i32
  }
  func.func @transform_4(%arg0: i32, %arg1: i32) -> (i32, i32, i32) {
    %c0_i32 = arith.constant 0 : i32
    %c0_i32_0 = arith.constant 0 : i32
    return %arg0, %arg1, %c0_i32 : i32, i32, i32
  }
}

</mosaic_0001>

<llo_original>
// kernel: prediction_alignment_loss_batched.1
$region0: #{prediction_alignment_loss_batched.1}
  #allocation0 [shape = 'u32[]', space=smem, size = 0x4, offset = 0x4, fixed_abs, tag = 'smem constant byte address 0x4 - core index']
  #allocation1 [shape = 'u32[144,128]{1,0:T(1,128)}', space=vmem, size = 0x12000, scoped, tag = 'internal scratch']
  %s0 = inlined_call_operand.hbm [shape: f32[2,8,32], index: 0, kind: input, shape index: {}]
  %s1 = inlined_call_operand.hbm [shape: f32[2,8,32], index: 1, kind: input, shape index: {}]
  %s2 = inlined_call_operand.hbm [shape: f32[2,1,1,1], index: 2, kind: output, shape index: {0}]
  %s3 = inlined_call_operand.hbm [shape: f32[2,8,8], index: 3, kind: output, shape index: {1}]
  %s4 = inlined_call_operand.hbm [shape: f32[2,8,8], index: 4, kind: output, shape index: {2}]
  %5 = xla_tuple %s2, %s3, %s4
  %s6 = sld [smem:[#allocation0]]
  $region65: #{prediction_alignment_loss_batched.1} parent=0
    _
  %s8 = ssub.s32 1, %s6
  %s9 = scalar_select 0, %s8, %s6
  $region1: #{prediction_alignment_loss_batched.1} parent=0
    #allocation2 [shape = 'u8[8192]{0}', space=vmem, size = 0x2000, scoped, tag = 'input window, operand 0']
    #allocation3 [shape = 's32[2]{0}', space=sflag, size = 0x8, scoped, tag = 'scoped memory for prediction_alignment_loss_batched.1']
    #allocation4 [shape = 's32[2]{0}', space=sflag, size = 0x8, scoped, tag = 'scoped memory for prediction_alignment_loss_batched.1']
    #allocation5 [shape = 'u8[8192]{0}', space=vmem, size = 0x2000, scoped, tag = 'input window, operand 1']
    #allocation6 [shape = 's32[2]{0}', space=sflag, size = 0x8, scoped, tag = 'scoped memory for prediction_alignment_loss_batched.1']
    #allocation7 [shape = 'u8[1024]{0}', space=vmem, size = 0x400, scoped, tag = 'output window, operand 0']
    #allocation8 [shape = 'u8[8192]{0}', space=vmem, size = 0x2000, scoped, tag = 'output window, operand 1']
    #allocation9 [shape = 's32[2]{0}', space=sflag, size = 0x8, scoped, tag = 'scoped memory for prediction_alignment_loss_batched.1']
    #allocation10 [shape = 'u8[8192]{0}', space=vmem, size = 0x2000, scoped, tag = 'output window, operand 2']
    %10 = vsyncpa [#allocation3], 0
    %s11 = scalar_lea.sflag [#allocation3], 1
    %12 = vsyncpa %s11, 0
    %13 = vsyncpa [#allocation6], 0
    %s14 = scalar_lea.sflag [#allocation6], 1
    %15 = vsyncpa %s14, 0
    %16 = vsyncpa [#allocation4], 0
    %s17 = scalar_lea.sflag [#allocation4], 1
    %18 = vsyncpa %s17, 0
    %19 = vsyncpa [#allocation9], 0
    %s20 = scalar_lea.sflag [#allocation9], 1
    %21 = vsyncpa %s20, 0
    loop: start=0, step=1, limit=4
    $region2: #{prediction_alignment_loss_batched.1} parent=1 // loop_pre_header
      _
    $region3: #{prediction_alignment_loss_batched.1} parent=1 // loop_header
      %s23 = sphi 0, %s27
      %p24 = scmp.ge.s32.totalorder %s23, 4
      %s30 = sphi 0, %s42
      %s31 = sphi 0, %s38
      %s32 = sphi 0, %s30
      %s33 = sphi 0, %s31
      %s34 = sphi 0, %s32
      %s35 = sphi 0, %s33
      %s45 = sphi 0, %s47
      %s48 = sphi 0, %s45
      %s49 = sphi 0, %s48
      %s65 = sphi 0, %s49
      %s71 = sphi 0, %s73
      %s74 = sphi 0, %s71
      %s75 = sphi 0, %s74
      %s91 = sphi 0, %s75
      %s99 = sphi 0, %s101
      %s102 = sphi 0, %s99
      %s103 = sphi 0, %s102
      %s119 = sphi 0, %s103
      %s127 = sphi 0, %s129
      %s130 = sphi 0, %s127
      %s131 = sphi 0, %s130
      %s147 = sphi 0, %s131
      %s155 = sphi 0, %s157
      %s158 = sphi 0, %s155
      %s159 = sphi 0, %s158
      %s175 = sphi 0, %s159
    $region4: #{prediction_alignment_loss_batched.1} parent=1 // loop_header_branch
      %26 = sbr.rel (%p24) target = $region8
    $region5: #{prediction_alignment_loss_batched.1} parent=1 // loop_body
      %s28 = ssub.s32 %s23, 1
      %s29 = ssub.s32 %s23, 2
      %s36 = sadd.s32 1, %s31
      %p37 = scmp.ge.s32.totalorder %s36, 1
      %s38 = scalar_select %p37, 0, %s36
      %s39 = sadd.s32 1, %s30
      %s40 = scalar_select %p37, %s39, %s30
      %p41 = scmp.ge.s32.totalorder %s40, 2
      %s42 = scalar_select %p41, 0, %s40
      %s43 = ssub.s32 %s30, %s42
      %p44 = scmp.eq.s32.totalorder %s43, 0
      %s46 = sadd.s32 %s45, 1
      %s47 = scalar_select %p44, %s45, %s46
      %p50 = pneg %p44
      %p51 = scmp.eq.s32.totalorder %s23, 1
      %p52 = por %p50, %p51
      %p53 = scmp.ne.s32.totalorder %s45, %s48
      %p54 = scmp.eq.s32.totalorder %s23, 0
      %p55 = por %p53, %p54
      %p56 = scmp.ne.s32.totalorder %s45, %s48
      %p57 = scmp.eq.s32.totalorder %s28, 1
      %p58 = por %p56, %p57
      %p59 = scmp.ne.s32.totalorder %s48, %s49
      %p60 = scmp.eq.s32.totalorder %s28, 0
      %p61 = por %p59, %p60
      %p62 = scmp.ne.s32.totalorder %s48, %s49
      %p63 = scmp.eq.s32.totalorder %s29, 1
      %p64 = por %p62, %p63
      %p66 = scmp.ne.s32.totalorder %s49, %s65
      %p67 = scmp.eq.s32.totalorder %s29, 0
      %p68 = por %p66, %p67
      %s69 = ssub.s32 %s30, %s42
      %p70 = scmp.eq.s32.totalorder %s69, 0
      %s72 = sadd.s32 %s71, 1
      %s73 = scalar_select %p70, %s71, %s72
      %p76 = pneg %p70
      %p77 = scmp.eq.s32.totalorder %s23, 1
      %p78 = por %p76, %p77
      %p79 = scmp.ne.s32.totalorder %s71, %s74
      %p80 = scmp.eq.s32.totalorder %s23, 0
      %p81 = por %p79, %p80
      %p82 = scmp.ne.s32.totalorder %s71, %s74
      %p83 = scmp.eq.s32.totalorder %s28, 1
      %p84 = por %p82, %p83
      %p85 = scmp.ne.s32.totalorder %s74, %s75
      %p86 = scmp.eq.s32.totalorder %s28, 0
      %p87 = por %p85, %p86
      %p88 = scmp.ne.s32.totalorder %s74, %s75
      %p89 = scmp.eq.s32.totalorder %s29, 1
      %p90 = por %p88, %p89
      %p92 = scmp.ne.s32.totalorder %s75, %s91
      %p93 = scmp.eq.s32.totalorder %s29, 0
      %p94 = por %p92, %p93
      %s95 = ssub.s32 %s30, %s42
      %s96 = ssub.s32 %s31, %s38
      %s97 = sor.u32 %s95, %s96
      %p98 = scmp.eq.s32.totalorder %s97, 0
      %s100 = sadd.s32 %s99, 1
      %s101 = scalar_select %p98, %s99, %s100
      %p104 = pneg %p98
      %p105 = scmp.eq.s32.totalorder %s23, 1
      %p106 = por %p104, %p105
      %p107 = scmp.ne.s32.totalorder %s99, %s102
      %p108 = scmp.eq.s32.totalorder %s23, 0
      %p109 = por %p107, %p108
      %p110 = scmp.ne.s32.totalorder %s99, %s102
      %p111 = scmp.eq.s32.totalorder %s28, 1
      %p112 = por %p110, %p111
      %p113 = scmp.ne.s32.totalorder %s102, %s103
      %p114 = scmp.eq.s32.totalorder %s28, 0
      %p115 = por %p113, %p114
      %p116 = scmp.ne.s32.totalorder %s102, %s103
      %p117 = scmp.eq.s32.totalorder %s29, 1
      %p118 = por %p116, %p117
      %p120 = scmp.ne.s32.totalorder %s103, %s119
      %p121 = scmp.eq.s32.totalorder %s29, 0
      %p122 = por %p120, %p121
      %s123 = ssub.s32 %s30, %s42
      %s124 = ssub.s32 %s31, %s38
      %s125 = sor.u32 %s123, %s124
      %p126 = scmp.eq.s32.totalorder %s125, 0
      %s128 = sadd.s32 %s127, 1
      %s129 = scalar_select %p126, %s127, %s128
      %p132 = pneg %p126
      %p133 = scmp.eq.s32.totalorder %s23, 1
      %p134 = por %p132, %p133
      %p135 = scmp.ne.s32.totalorder %s127, %s130
      %p136 = scmp.eq.s32.totalorder %s23, 0
      %p137 = por %p135, %p136
      %p138 = scmp.ne.s32.totalorder %s127, %s130
      %p139 = scmp.eq.s32.totalorder %s28, 1
      %p140 = por %p138, %p139
      %p141 = scmp.ne.s32.totalorder %s130, %s131
      %p142 = scmp.eq.s32.totalorder %s28, 0
      %p143 = por %p141, %p142
      %p144 = scmp.ne.s32.totalorder %s130, %s131
      %p145 = scmp.eq.s32.totalorder %s29, 1
      %p146 = por %p144, %p145
      %p148 = scmp.ne.s32.totalorder %s131, %s147
      %p149 = scmp.eq.s32.totalorder %s29, 0
      %p150 = por %p148, %p149
      %s151 = ssub.s32 %s30, %s42
      %s152 = ssub.s32 %s31, %s38
      %s153 = sor.u32 %s151, %s152
      %p154 = scmp.eq.s32.totalorder %s153, 0
      %s156 = sadd.s32 %s155, 1
      %s157 = scalar_select %p154, %s155, %s156
      %p160 = pneg %p154
      %p161 = scmp.eq.s32.totalorder %s23, 1
      %p162 = por %p160, %p161
      %p163 = scmp.ne.s32.totalorder %s155, %s158
      %p164 = scmp.eq.s32.totalorder %s23, 0
      %p165 = por %p163, %p164
      %p166 = scmp.ne.s32.totalorder %s155, %s158
      %p167 = scmp.eq.s32.totalorder %s28, 1
      %p168 = por %p166, %p167
      %p169 = scmp.ne.s32.totalorder %s158, %s159
      %p170 = scmp.eq.s32.totalorder %s28, 0
      %p171 = por %p169, %p170
      %p172 = scmp.ne.s32.totalorder %s158, %s159
      %p173 = scmp.eq.s32.totalorder %s29, 1
      %p174 = por %p172, %p173
      %p176 = scmp.ne.s32.totalorder %s159, %s175
      %p177 = scmp.eq.s32.totalorder %s29, 0
      %p178 = por %p176, %p177
      %p179 = scmp.le.s32.totalorder 1, %s23
      %p180 = scmp.lt.s32.totalorder %s23, 3
      %p181 = pnand %p179, %p180
      %p182 = pneg %p181
      // Predicated region
      $region9: #{prediction_alignment_loss_batched.1} parent=5 // pred_check
        _
      $region10: #{prediction_alignment_loss_batched.1} parent=5 // pred_check_branch
        %184 = sbr.rel (%p181) target = $region12
      $region11: #{prediction_alignment_loss_batched.1} parent=5 // pred_region
        %s185 = ssub.s32 %s23, 1
      $region12: #{prediction_alignment_loss_batched.1} parent=5 // pred_fallthru
        _
      %p186 = scmp.lt.s32.totalorder %s23, 2
      // Predicated region
      $region13: #{prediction_alignment_loss_batched.1} parent=5 // pred_check
        %p187 = pneg %p186
      $region14: #{prediction_alignment_loss_batched.1} parent=5 // pred_check_branch
        %189 = sbr.rel (%p187) target = $region16
      $region15: #{prediction_alignment_loss_batched.1} parent=5 // pred_region
        // Predicated region
        $region17: #{prediction_alignment_loss_batched.1} parent=15 // pred_check
          %p190 = pneg %p55
        $region18: #{prediction_alignment_loss_batched.1} parent=15 // pred_check_branch
          %192 = sbr.rel (%p190) target = $region20
        $region19: #{prediction_alignment_loss_batched.1} parent=15 // pred_region
          %s193 = sand.u32 %s45, 1
          %s194 = scalar_lea.sflag [#allocation3], %s193
          %s195 = sand.u32 %s45, 1
          %s196 = smul.addr %s195, 8
          %s197 = scalar_lea.vmem [#allocation2], %s196
          %s199 = ssub.s32 128, 128
          %200 = vsyncadd %s194, %s199
          %s201 = smul.addr %s30, 128
          %s202 = scalar_lea.hbm %s0, %s201
          %s204 = sshll.u32 %s197, 4
          %s205 = int_to_ptr.vmem [resolvable:$true] %s204
          %207 = dma.hbm_to_vmem [thread:$0]  %s202, 128, %s205, %s194
        $region20: #{prediction_alignment_loss_batched.1} parent=15 // pred_fallthru
          _
        // Predicated region
        $region21: #{prediction_alignment_loss_batched.1} parent=15 // pred_check
          %p208 = pneg %p81
        $region22: #{prediction_alignment_loss_batched.1} parent=15 // pred_check_branch
          %210 = sbr.rel (%p208) target = $region24
        $region23: #{prediction_alignment_loss_batched.1} parent=15 // pred_region
          %s211 = sand.u32 %s71, 1
          %s212 = scalar_lea.sflag [#allocation6], %s211
          %s213 = sand.u32 %s71, 1
          %s214 = smul.addr %s213, 8
          %s215 = scalar_lea.vmem [#allocation5], %s214
          %s217 = ssub.s32 128, 128
          %218 = vsyncadd %s212, %s217
          %s219 = smul.addr %s30, 128
          %s220 = scalar_lea.hbm %s1, %s219
          %s222 = sshll.u32 %s215, 4
          %s223 = int_to_ptr.vmem [resolvable:$true] %s222
          %225 = dma.hbm_to_vmem [thread:$0]  %s220, 128, %s223, %s212
        $region24: #{prediction_alignment_loss_batched.1} parent=15 // pred_fallthru
          _
      $region16: #{prediction_alignment_loss_batched.1} parent=5 // pred_fallthru
        _
      %p226 = scmp.le.s32.totalorder 1, %s23
      %p227 = scmp.lt.s32.totalorder %s23, 3
      %p228 = pnand %p226, %p227
      %p229 = pneg %p228
      // Predicated region
      $region25: #{prediction_alignment_loss_batched.1} parent=5 // pred_check
        _
      $region26: #{prediction_alignment_loss_batched.1} parent=5 // pred_check_branch
        %231 = sbr.rel (%p228) target = $region28
      $region27: #{prediction_alignment_loss_batched.1} parent=5 // pred_region
        %s232 = ssub.s32 %s23, 1
        %s233 = sand.u32 %s48, 1
        %s234 = scalar_lea.sflag [#allocation3], %s233
        %s235 = sand.u32 %s48, 1
        %s236 = smul.addr %s235, 8
        %s237 = scalar_lea.vmem [#allocation2], %s236
        // Predicated region
        $region29: #{prediction_alignment_loss_batched.1} parent=27 // pred_check
          %p238 = pneg %p61
        $region30: #{prediction_alignment_loss_batched.1} parent=27 // pred_check_branch
          %240 = sbr.rel (%p238) target = $region32
        $region31: #{prediction_alignment_loss_batched.1} parent=27 // pred_region
          %241 = dma.done %s234, 128
        $region32: #{prediction_alignment_loss_batched.1} parent=27 // pred_fallthru
          _
        %s242 = sand.u32 %s74, 1
        %s243 = scalar_lea.sflag [#allocation6], %s242
        %s244 = sand.u32 %s74, 1
        %s245 = smul.addr %s244, 8
        %s246 = scalar_lea.vmem [#allocation5], %s245
        // Predicated region
        $region33: #{prediction_alignment_loss_batched.1} parent=27 // pred_check
          %p247 = pneg %p87
        $region34: #{prediction_alignment_loss_batched.1} parent=27 // pred_check_branch
          %249 = sbr.rel (%p247) target = $region36
        $region35: #{prediction_alignment_loss_batched.1} parent=27 // pred_region
          %250 = dma.done %s243, 128
        $region36: #{prediction_alignment_loss_batched.1} parent=27 // pred_fallthru
          _
        %s251 = sand.u32 %s48, 1
        %s252 = scalar_lea.sflag [#allocation3], %s251
        %s253 = sand.u32 %s48, 1
        %s254 = smul.addr %s253, 8
        %s255 = scalar_lea.vmem [#allocation2], %s254
        %p256 = pneg %p61
        %p257 = pneg %p58
        %s258 = sand.u32 %s74, 1
        %s259 = scalar_lea.sflag [#allocation6], %s258
        %s260 = sand.u32 %s74, 1
        %s261 = smul.addr %s260, 8
        %s262 = scalar_lea.vmem [#allocation5], %s261
        %p263 = pneg %p87
        %p264 = pneg %p84
        %p265 = pneg %p115
        %p266 = pneg %p112
        %s267 = sand.u32 %s102, 1
        %s268 = scalar_lea.sflag [#allocation4], %s267
        %s269 = sand.u32 %s102, 1
        %s270 = scalar_lea.vmem [#allocation7], %s269
        %p271 = pneg %p143
        %p272 = pneg %p140
        %s273 = sand.u32 %s28, 1
        %s274 = scalar_lea.sflag [#allocation9], %s273
        %s275 = sand.u32 %s130, 1
        %s276 = smul.addr %s275, 8
        %s277 = scalar_lea.vmem [#allocation8], %s276
        %p278 = pneg %p171
        %p279 = pneg %p168
        %s280 = sand.u32 %s28, 1
        %s281 = scalar_lea.sflag [#allocation9], %s280
        %s282 = sand.u32 %s158, 1
        %s283 = smul.addr %s282, 8
        %s284 = scalar_lea.vmem [#allocation10], %s283
        %s285 = smul.u32 %s33, 8
        %v286 = vld [vmem:[%s237] sm:$0xff]
        %v287 = vld [vmem:[%s246] sm:$0xff]
        %v288 = vmul.f32 %v286, %v286
        %vm289 = vcmask 261120
        %v290 = vsel %vm289, %v288, 0.0
        %291 = vadd.xlane.f32.xlu0 %v290
        %v292 = vpop.xlane.xlu0 %291
        %v293 = vrsqrt.pop %v292
        %v294 = vmul.f32 %v292, %v293
        %vm295 = vcmp.eq.f32.partialorder %v292, inf
        %v296 = vsel %vm295, %v292, %v294
        %vm297 = vcmp.eq.f32.partialorder %v292, 0.0
        %v298 = vand.u32 %v292, 2147483648
        %v299 = vsel %vm297, %v298, %v296
        %v300 = vadd.f32 %v299, 1e-12
        %v301 = vrcp.pop %v300
        %v302 = vmul.f32 %v287, %v287
        %v303 = vsel %vm289, %v302, 0.0
        %304 = vadd.xlane.f32.xlu0 %v303
        %v305 = vpop.xlane.xlu0 %304
        %v306 = vrsqrt.pop %v305
        %v307 = vmul.f32 %v305, %v306
        %vm308 = vcmp.eq.f32.partialorder %v305, inf
        %v309 = vsel %vm308, %v305, %v307
        %vm310 = vcmp.eq.f32.partialorder %v305, 0.0
        %v311 = vand.u32 %v305, 2147483648
        %v312 = vsel %vm310, %v311, %v309
        %v313 = vadd.f32 %v312, 1e-12
        %v314 = vrcp.pop %v313
        %v315 = vmul.f32 %v286, %v301
        %v316 = vmul.f32 %v287, %v314
        %s317 = scalar_lea.vmem %s237, %s285 [#allocation2]
        %v318 = vld [vmem:[%s317] sm:$0xff]
        %s319 = scalar_lea.vmem %s246, %s285 [#allocation5]
        %v320 = vld [vmem:[%s319] sm:$0xff]
        %v321 = vmul.f32 %v318, %v318
        %v322 = vsel %vm289, %v321, 0.0
        %323 = vadd.xlane.f32.xlu0 %v322
        %v324 = vpop.xlane.xlu0 %323
        %v325 = vrsqrt.pop %v324
        %v326 = vmul.f32 %v324, %v325
        %vm327 = vcmp.eq.f32.partialorder %v324, inf
        %v328 = vsel %vm327, %v324, %v326
        %vm329 = vcmp.eq.f32.partialorder %v324, 0.0
        %v330 = vand.u32 %v324, 2147483648
        %v331 = vsel %vm329, %v330, %v328
        %v332 = vadd.f32 %v331, 1e-12
        %v333 = vrcp.pop %v332
        %v334 = vmul.f32 %v320, %v320
        %v335 = vsel %vm289, %v334, 0.0
        %336 = vadd.xlane.f32.xlu0 %v335
        %v337 = vpop.xlane.xlu0 %336
        %v338 = vrsqrt.pop %v337
        %v339 = vmul.f32 %v337, %v338
        %vm340 = vcmp.eq.f32.partialorder %v337, inf
        %v341 = vsel %vm340, %v337, %v339
        %vm342 = vcmp.eq.f32.partialorder %v337, 0.0
        %v343 = vand.u32 %v337, 2147483648
        %v344 = vsel %vm342, %v343, %v341
        %v345 = vadd.f32 %v344, 1e-12
        %v346 = vrcp.pop %v345
        %v348 = vsel %vm289, %v318, 0
        %v351 = vsel %vm289, %v316, 0
        %353 = vmatprep.subr.mxu0 0.0
        %354 = vmatpush1.xpose.msra.mxu0 %v351
        %355 = vmatprep.subr.mxu0 0.0
        %356 = vmatpush1.xpose.msra.mxu0 0.0
        %357 = vmatprep.subr.mxu0 0.0
        %358 = vmatpush1.xpose.msra.mxu0 0.0
        %359 = vmatprep.subr.mxu0 0.0
        %360 = vmatpush1.xpose.msra.mxu0 0.0
        %361 = vmatprep.subr.mxu0 0.0
        %362 = vmatpush1.xpose.msra.mxu0 0.0
        %363 = vmatprep.subr.mxu0 0.0
        %364 = vmatpush1.xpose.msra.mxu0 0.0
        %365 = vmatprep.subr.mxu0 0.0
        %366 = vmatpush1.xpose.msra.mxu0 0.0
        %367 = vmatprep.subr.mxu0 0.0
        %368 = vmatpush1.xpose.msra.mxu0 0.0
        %369 = vmatprep.subr.mxu0 0.0
        %370 = vmatpush1.xpose.msra.mxu0 0.0
        %371 = vmatprep.subr.mxu0 0.0
        %372 = vmatpush1.xpose.msra.mxu0 0.0
        %373 = vmatprep.subr.mxu0 0.0
        %374 = vmatpush1.xpose.msra.mxu0 0.0
        %375 = vmatprep.subr.mxu0 0.0
        %376 = vmatpush1.xpose.msra.mxu0 0.0
        %377 = vmatprep.subr.mxu0 0.0
        %378 = vmatpush1.xpose.msra.mxu0 0.0
        %379 = vmatprep.subr.mxu0 0.0
        %380 = vmatpush1.xpose.msra.mxu0 0.0
        %381 = vmatprep.subr.mxu0 0.0
        %382 = vmatpush1.xpose.msra.mxu0 0.0
        %383 = vmatprep.subr.mxu0 0.0
        %384 = vmatpush1.xpose.msra.mxu0 0.0
        %385 = vmatprep.subr.mxu0 0.0
        %386 = vmatpush1.xpose.msra.mxu0 0.0
        %387 = vmatprep.subr.mxu0 0.0
        %388 = vmatpush1.xpose.msra.mxu0 0.0
        %389 = vmatprep.subr.mxu0 0.0
        %390 = vmatpush1.xpose.msra.mxu0 0.0
        %391 = vmatprep.subr.mxu0 0.0
        %392 = vmatpush1.xpose.msra.mxu0 0.0
        %393 = vmatprep.subr.mxu0 0.0
        %394 = vmatpush1.xpose.msra.mxu0 0.0
        %395 = vmatprep.subr.mxu0 0.0
        %396 = vmatpush1.xpose.msra.mxu0 0.0
        %397 = vmatprep.subr.mxu0 0.0
        %398 = vmatpush1.xpose.msra.mxu0 0.0
        %399 = vmatprep.subr.mxu0 0.0
        %400 = vmatpush1.xpose.msra.mxu0 0.0
        %401 = vmatprep.subr.mxu0 0.0
        %402 = vmatpush1.xpose.msra.mxu0 0.0
        %403 = vmatprep.subr.mxu0 0.0
        %404 = vmatpush1.xpose.msra.mxu0 0.0
        %405 = vmatprep.subr.mxu0 0.0
        %406 = vmatpush1.xpose.msra.mxu0 0.0
        %407 = vmatprep.subr.mxu0 0.0
        %408 = vmatpush1.xpose.msra.mxu0 0.0
        %409 = vmatprep.subr.mxu0 0.0
        %410 = vmatpush1.xpose.msra.mxu0 0.0
        %411 = vmatprep.subr.mxu0 0.0
        %412 = vmatpush1.xpose.msra.mxu0 0.0
        %413 = vmatprep.subr.mxu0 0.0
        %414 = vmatpush1.xpose.msra.mxu0 0.0
        %415 = vmatprep.subr.mxu0 0.0
        %416 = vmatpush1.xpose.msra.mxu0 0.0
        %417 = vmatprep.mubr.f32.mxu0 0.0
        %418 = vmatmul.mubr.f32.gmra.mrb[0].mxu0 %v348
        %v419 = vpop.f32.mrb[0].mxu0
        %v420 = vadd.f32 0.0, %v419
        %v421 = vpop.f32.mrb[0].mxu0
        %422 = vdwg.mxu0
        %v423 = vmul.f32 %v420, %v333
        %v425 = vsel %vm289, %v320, 0
        %v428 = vsel %vm289, %v315, 0
        %430 = vmatprep.subr.mxu0 0.0
        %431 = vmatpush1.xpose.msra.mxu0 %v428
        %432 = vmatprep.subr.mxu0 0.0
        %433 = vmatpush1.xpose.msra.mxu0 0.0
        %434 = vmatprep.subr.mxu0 0.0
        %435 = vmatpush1.xpose.msra.mxu0 0.0
        %436 = vmatprep.subr.mxu0 0.0
        %437 = vmatpush1.xpose.msra.mxu0 0.0
        %438 = vmatprep.subr.mxu0 0.0
        %439 = vmatpush1.xpose.msra.mxu0 0.0
        %440 = vmatprep.subr.mxu0 0.0
        %441 = vmatpush1.xpose.msra.mxu0 0.0
        %442 = vmatprep.subr.mxu0 0.0
        %443 = vmatpush1.xpose.msra.mxu0 0.0
        %444 = vmatprep.subr.mxu0 0.0
        %445 = vmatpush1.xpose.msra.mxu0 0.0
        %446 = vmatprep.subr.mxu0 0.0
        %447 = vmatpush1.xpose.msra.mxu0 0.0
        %448 = vmatprep.subr.mxu0 0.0
        %449 = vmatpush1.xpose.msra.mxu0 0.0
        %450 = vmatprep.subr.mxu0 0.0
        %451 = vmatpush1.xpose.msra.mxu0 0.0
        %452 = vmatprep.subr.mxu0 0.0
        %453 = vmatpush1.xpose.msra.mxu0 0.0
        %454 = vmatprep.subr.mxu0 0.0
        %455 = vmatpush1.xpose.msra.mxu0 0.0
        %456 = vmatprep.subr.mxu0 0.0
        %457 = vmatpush1.xpose.msra.mxu0 0.0
        %458 = vmatprep.subr.mxu0 0.0
        %459 = vmatpush1.xpose.msra.mxu0 0.0
        %460 = vmatprep.subr.mxu0 0.0
        %461 = vmatpush1.xpose.msra.mxu0 0.0
        %462 = vmatprep.subr.mxu0 0.0
        %463 = vmatpush1.xpose.msra.mxu0 0.0
        %464 = vmatprep.subr.mxu0 0.0
        %465 = vmatpush1.xpose.msra.mxu0 0.0
        %466 = vmatprep.subr.mxu0 0.0
        %467 = vmatpush1.xpose.msra.mxu0 0.0
        %468 = vmatprep.subr.mxu0 0.0
        %469 = vmatpush1.xpose.msra.mxu0 0.0
        %470 = vmatprep.subr.mxu0 0.0
        %471 = vmatpush1.xpose.msra.mxu0 0.0
        %472 = vmatprep.subr.mxu0 0.0
        %473 = vmatpush1.xpose.msra.mxu0 0.0
        %474 = vmatprep.subr.mxu0 0.0
        %475 = vmatpush1.xpose.msra.mxu0 0.0
        %476 = vmatprep.subr.mxu0 0.0
        %477 = vmatpush1.xpose.msra.mxu0 0.0
        %478 = vmatprep.subr.mxu0 0.0
        %479 = vmatpush1.xpose.msra.mxu0 0.0
        %480 = vmatprep.subr.mxu0 0.0
        %481 = vmatpush1.xpose.msra.mxu0 0.0
        %482 = vmatprep.subr.mxu0 0.0
        %483 = vmatpush1.xpose.msra.mxu0 0.0
        %484 = vmatprep.subr.mxu0 0.0
        %485 = vmatpush1.xpose.msra.mxu0 0.0
        %486 = vmatprep.subr.mxu0 0.0
        %487 = vmatpush1.xpose.msra.mxu0 0.0
        %488 = vmatprep.subr.mxu0 0.0
        %489 = vmatpush1.xpose.msra.mxu0 0.0
        %490 = vmatprep.subr.mxu0 0.0
        %491 = vmatpush1.xpose.msra.mxu0 0.0
        %492 = vmatprep.subr.mxu0 0.0
        %493 = vmatpush1.xpose.msra.mxu0 0.0
        %494 = vmatprep.mubr.f32.mxu0 0.0
        %495 = vmatmul.mubr.f32.gmra.mrb[0].mxu0 %v425
        %v496 = vpop.f32.mrb[0].mxu0
        %v497 = vadd.f32 0.0, %v496
        %v498 = vpop.f32.mrb[0].mxu0
        %499 = vdwg.mxu0
        %v500 = vmul.f32 %v497, %v346
        %501 = vmatprep.subr.mxu0 0.0
        %502 = vmatpush1.xpose.msra.mxu0 %v351
        %503 = vmatprep.subr.mxu0 0.0
        %504 = vmatpush1.xpose.msra.mxu0 0.0
        %505 = vmatprep.subr.mxu0 0.0
        %506 = vmatpush1.xpose.msra.mxu0 0.0
        %507 = vmatprep.subr.mxu0 0.0
        %508 = vmatpush1.xpose.msra.mxu0 0.0
        %509 = vmatprep.subr.mxu0 0.0
        %510 = vmatpush1.xpose.msra.mxu0 0.0
        %511 = vmatprep.subr.mxu0 0.0
        %512 = vmatpush1.xpose.msra.mxu0 0.0
        %513 = vmatprep.subr.mxu0 0.0
        %514 = vmatpush1.xpose.msra.mxu0 0.0
        %515 = vmatprep.subr.mxu0 0.0
        %516 = vmatpush1.xpose.msra.mxu0 0.0
        %517 = vmatprep.subr.mxu0 0.0
        %518 = vmatpush1.xpose.msra.mxu0 0.0
        %519 = vmatprep.subr.mxu0 0.0
        %520 = vmatpush1.xpose.msra.mxu0 0.0
        %521 = vmatprep.subr.mxu0 0.0
        %522 = vmatpush1.xpose.msra.mxu0 0.0
        %523 = vmatprep.subr.mxu0 0.0
        %524 = vmatpush1.xpose.msra.mxu0 0.0
        %525 = vmatprep.subr.mxu0 0.0
        %526 = vmatpush1.xpose.msra.mxu0 0.0
        %527 = vmatprep.subr.mxu0 0.0
        %528 = vmatpush1.xpose.msra.mxu0 0.0
        %529 = vmatprep.subr.mxu0 0.0
        %530 = vmatpush1.xpose.msra.mxu0 0.0
        %531 = vmatprep.subr.mxu0 0.0
        %532 = vmatpush1.xpose.msra.mxu0 0.0
        %533 = vmatprep.subr.mxu0 0.0
        %534 = vmatpush1.xpose.msra.mxu0 0.0
        %535 = vmatprep.subr.mxu0 0.0
        %536 = vmatpush1.xpose.msra.mxu0 0.0
        %537 = vmatprep.subr.mxu0 0.0
        %538 = vmatpush1.xpose.msra.mxu0 0.0
        %539 = vmatprep.subr.mxu0 0.0
        %540 = vmatpush1.xpose.msra.mxu0 0.0
        %541 = vmatprep.subr.mxu0 0.0
        %542 = vmatpush1.xpose.msra.mxu0 0.0
        %543 = vmatprep.subr.mxu0 0.0
        %544 = vmatpush1.xpose.msra.mxu0 0.0
        %545 = vmatprep.subr.mxu0 0.0
        %546 = vmatpush1.xpose.msra.mxu0 0.0
        %547 = vmatprep.subr.mxu0 0.0
        %548 = vmatpush1.xpose.msra.mxu0 0.0
        %549 = vmatprep.subr.mxu0 0.0
        %550 = vmatpush1.xpose.msra.mxu0 0.0
        %551 = vmatprep.subr.mxu0 0.0
        %552 = vmatpush1.xpose.msra.mxu0 0.0
        %553 = vmatprep.subr.mxu0 0.0
        %554 = vmatpush1.xpose.msra.mxu0 0.0
        %555 = vmatprep.subr.mxu0 0.0
        %556 = vmatpush1.xpose.msra.mxu0 0.0
        %557 = vmatprep.subr.mxu0 0.0
        %558 = vmatpush1.xpose.msra.mxu0 0.0
        %559 = vmatprep.subr.mxu0 0.0
        %560 = vmatpush1.xpose.msra.mxu0 0.0
        %561 = vmatprep.subr.mxu0 0.0
        %562 = vmatpush1.xpose.msra.mxu0 0.0
        %563 = vmatprep.subr.mxu0 0.0
        %564 = vmatpush1.xpose.msra.mxu0 0.0
        %565 = vmatprep.mubr.f32.mxu0 0.0
        %566 = vmatmul.mubr.f32.gmra.mrb[0].mxu0 %v425
        %v567 = vpop.f32.mrb[0].mxu0
        %v568 = vadd.f32 0.0, %v567
        %v569 = vpop.f32.mrb[0].mxu0
        %570 = vdwg.mxu0
        %v571 = vmul.f32 %v568, %v346
        %vm572 = vcmask 64512
        %v573 = vsel %vm572, %v423, -inf
        %574 = vmax.xlane.f32.xlu0 %v573
        %v575 = vpop.xlane.xlu0 %574
        %v576 = vsub.f32 %v423, %v575
        %v577 = vmul.f32 %v576, 1.442695
        %v578 = vpow.pop %v577
        %v579 = vsel %vm572, %v578, 0.0
        %580 = vadd.xlane.f32.xlu0 %v579
        %v581 = vpop.xlane.xlu0 %580
        %v582 = vrcp.pop %v581
        %v583 = vmul.f32 %v578, %v582
        %v584 = vsel %vm572, %v500, -inf
        %585 = vmax.xlane.f32.xlu0 %v584
        %v586 = vpop.xlane.xlu0 %585
        %v587 = vsub.f32 %v500, %v586
        %v588 = vmul.f32 %v587, 1.442695
        %v589 = vpow.pop %v588
        %v590 = vsel %vm572, %v589, 0.0
        %591 = vadd.xlane.f32.xlu0 %v590
        %v592 = vpop.xlane.xlu0 %591
        %v593 = vrcp.pop %v592
        %v594 = vmul.f32 %v589, %v593
        %v595 = vsel %vm572, %v571, -inf
        %596 = vmax.xlane.f32.xlu0 %v595
        %v597 = vpop.xlane.xlu0 %596
        %v598 = vsub.f32 %v571, %v597
        %v599 = vmul.f32 %v598, 1.442695
        %v600 = vpow.pop %v599
        %v601 = vsel %vm572, %v600, 0.0
        %602 = vadd.xlane.f32.xlu0 %v601
        %v603 = vpop.xlane.xlu0 %602
        %v604 = vrcp.pop %v603
        %v605 = vmul.f32 %v600, %v604
        %606 = vst.msk [vmem:[%s277] sm:$0xff] %vm572, %v583
        %607 = vst.msk [vmem:[%s284] sm:$0xff] %vm572, %v594
        %v609 = vsel %vm572, %v583, 0
        %611 = vmatprep.subr.mxu0 0.0
        %612 = vmatpush1.msra.mxu0 %v287
        %613 = vmatprep.subr.mxu0 0.0
        %614 = vmatpush1.msra.mxu0 0.0
        %615 = vmatprep.subr.mxu0 0.0
        %616 = vmatpush1.msra.mxu0 0.0
        %617 = vmatprep.subr.mxu0 0.0
        %618 = vmatpush1.msra.mxu0 0.0
        %619 = vmatprep.subr.mxu0 0.0
        %620 = vmatpush1.msra.mxu0 0.0
        %621 = vmatprep.subr.mxu0 0.0
        %622 = vmatpush1.msra.mxu0 0.0
        %623 = vmatprep.subr.mxu0 0.0
        %624 = vmatpush1.msra.mxu0 0.0
        %625 = vmatprep.subr.mxu0 0.0
        %626 = vmatpush1.msra.mxu0 0.0
        %627 = vmatprep.subr.mxu0 0.0
        %628 = vmatpush1.msra.mxu0 0.0
        %629 = vmatprep.subr.mxu0 0.0
        %630 = vmatpush1.msra.mxu0 0.0
        %631 = vmatprep.subr.mxu0 0.0
        %632 = vmatpush1.msra.mxu0 0.0
        %633 = vmatprep.subr.mxu0 0.0
        %634 = vmatpush1.msra.mxu0 0.0
        %635 = vmatprep.subr.mxu0 0.0
        %636 = vmatpush1.msra.mxu0 0.0
        %637 = vmatprep.subr.mxu0 0.0
        %638 = vmatpush1.msra.mxu0 0.0
        %639 = vmatprep.subr.mxu0 0.0
        %640 = vmatpush1.msra.mxu0 0.0
        %641 = vmatprep.subr.mxu0 0.0
        %642 = vmatpush1.msra.mxu0 0.0
        %643 = vmatprep.subr.mxu0 0.0
        %644 = vmatpush1.msra.mxu0 0.0
        %645 = vmatprep.subr.mxu0 0.0
        %646 = vmatpush1.msra.mxu0 0.0
        %647 = vmatprep.subr.mxu0 0.0
        %648 = vmatpush1.msra.mxu0 0.0
        %649 = vmatprep.subr.mxu0 0.0
        %650 = vmatpush1.msra.mxu0 0.0
        %651 = vmatprep.subr.mxu0 0.0
        %652 = vmatpush1.msra.mxu0 0.0
        %653 = vmatprep.subr.mxu0 0.0
        %654 = vmatpush1.msra.mxu0 0.0
        %655 = vmatprep.subr.mxu0 0.0
        %656 = vmatpush1.msra.mxu0 0.0
        %657 = vmatprep.subr.mxu0 0.0
        %658 = vmatpush1.msra.mxu0 0.0
        %659 = vmatprep.subr.mxu0 0.0
        %660 = vmatpush1.msra.mxu0 0.0
        %661 = vmatprep.subr.mxu0 0.0
        %662 = vmatpush1.msra.mxu0 0.0
        %663 = vmatprep.subr.mxu0 0.0
        %664 = vmatpush1.msra.mxu0 0.0
        %665 = vmatprep.subr.mxu0 0.0
        %666 = vmatpush1.msra.mxu0 0.0
        %667 = vmatprep.subr.mxu0 0.0
        %668 = vmatpush1.msra.mxu0 0.0
        %669 = vmatprep.subr.mxu0 0.0
        %670 = vmatpush1.msra.mxu0 0.0
        %671 = vmatprep.subr.mxu0 0.0
        %672 = vmatpush1.msra.mxu0 0.0
        %673 = vmatprep.subr.mxu0 0.0
        %674 = vmatpush1.msra.mxu0 0.0
        %675 = vmatprep.mubr.f32.mxu0 0.0
        %676 = vmatmul.mubr.f32.gmra.mrb[0].mxu0 %v609
        %v677 = vpop.f32.mrb[0].mxu0
        %v678 = vadd.f32 0.0, %v677
        %v679 = vpop.f32.mrb[0].mxu0
        %680 = vdwg.mxu0
        %v682 = vsel %vm572, %v594, 0
        %684 = vmatprep.subr.mxu0 0.0
        %685 = vmatpush1.msra.mxu0 %v286
        %686 = vmatprep.subr.mxu0 0.0
        %687 = vmatpush1.msra.mxu0 0.0
        %688 = vmatprep.subr.mxu0 0.0
        %689 = vmatpush1.msra.mxu0 0.0
        %690 = vmatprep.subr.mxu0 0.0
        %691 = vmatpush1.msra.mxu0 0.0
        %692 = vmatprep.subr.mxu0 0.0
        %693 = vmatpush1.msra.mxu0 0.0
        %694 = vmatprep.subr.mxu0 0.0
        %695 = vmatpush1.msra.mxu0 0.0
        %696 = vmatprep.subr.mxu0 0.0
        %697 = vmatpush1.msra.mxu0 0.0
        %698 = vmatprep.subr.mxu0 0.0
        %699 = vmatpush1.msra.mxu0 0.0
        %700 = vmatprep.subr.mxu0 0.0
        %701 = vmatpush1.msra.mxu0 0.0
        %702 = vmatprep.subr.mxu0 0.0
        %703 = vmatpush1.msra.mxu0 0.0
        %704 = vmatprep.subr.mxu0 0.0
        %705 = vmatpush1.msra.mxu0 0.0
        %706 = vmatprep.subr.mxu0 0.0
        %707 = vmatpush1.msra.mxu0 0.0
        %708 = vmatprep.subr.mxu0 0.0
        %709 = vmatpush1.msra.mxu0 0.0
        %710 = vmatprep.subr.mxu0 0.0
        %711 = vmatpush1.msra.mxu0 0.0
        %712 = vmatprep.subr.mxu0 0.0
        %713 = vmatpush1.msra.mxu0 0.0
        %714 = vmatprep.subr.mxu0 0.0
        %715 = vmatpush1.msra.mxu0 0.0
        %716 = vmatprep.subr.mxu0 0.0
        %717 = vmatpush1.msra.mxu0 0.0
        %718 = vmatprep.subr.mxu0 0.0
        %719 = vmatpush1.msra.mxu0 0.0
        %720 = vmatprep.subr.mxu0 0.0
        %721 = vmatpush1.msra.mxu0 0.0
        %722 = vmatprep.subr.mxu0 0.0
        %723 = vmatpush1.msra.mxu0 0.0
        %724 = vmatprep.subr.mxu0 0.0
        %725 = vmatpush1.msra.mxu0 0.0
        %726 = vmatprep.subr.mxu0 0.0
        %727 = vmatpush1.msra.mxu0 0.0
        %728 = vmatprep.subr.mxu0 0.0
        %729 = vmatpush1.msra.mxu0 0.0
        %730 = vmatprep.subr.mxu0 0.0
        %731 = vmatpush1.msra.mxu0 0.0
        %732 = vmatprep.subr.mxu0 0.0
        %733 = vmatpush1.msra.mxu0 0.0
        %734 = vmatprep.subr.mxu0 0.0
        %735 = vmatpush1.msra.mxu0 0.0
        %736 = vmatprep.subr.mxu0 0.0
        %737 = vmatpush1.msra.mxu0 0.0
        %738 = vmatprep.subr.mxu0 0.0
        %739 = vmatpush1.msra.mxu0 0.0
        %740 = vmatprep.subr.mxu0 0.0
        %741 = vmatpush1.msra.mxu0 0.0
        %742 = vmatprep.subr.mxu0 0.0
        %743 = vmatpush1.msra.mxu0 0.0
        %744 = vmatprep.subr.mxu0 0.0
        %745 = vmatpush1.msra.mxu0 0.0
        %746 = vmatprep.subr.mxu0 0.0
        %747 = vmatpush1.msra.mxu0 0.0
        %748 = vmatprep.mubr.f32.mxu0 0.0
        %749 = vmatmul.mubr.f32.gmra.mrb[0].mxu0 %v682
        %v750 = vpop.f32.mrb[0].mxu0
        %v751 = vadd.f32 0.0, %v750
        %v752 = vpop.f32.mrb[0].mxu0
        %753 = vdwg.mxu0
        %v755 = vsel %vm572, %v605, 0
        %757 = vmatprep.subr.mxu0 0.0
        %758 = vmatpush1.msra.mxu0 %v287
        %759 = vmatprep.subr.mxu0 0.0
        %760 = vmatpush1.msra.mxu0 0.0
        %761 = vmatprep.subr.mxu0 0.0
        %762 = vmatpush1.msra.mxu0 0.0
        %763 = vmatprep.subr.mxu0 0.0
        %764 = vmatpush1.msra.mxu0 0.0
        %765 = vmatprep.subr.mxu0 0.0
        %766 = vmatpush1.msra.mxu0 0.0
        %767 = vmatprep.subr.mxu0 0.0
        %768 = vmatpush1.msra.mxu0 0.0
        %769 = vmatprep.subr.mxu0 0.0
        %770 = vmatpush1.msra.mxu0 0.0
        %771 = vmatprep.subr.mxu0 0.0
        %772 = vmatpush1.msra.mxu0 0.0
        %773 = vmatprep.subr.mxu0 0.0
        %774 = vmatpush1.msra.mxu0 0.0
        %775 = vmatprep.subr.mxu0 0.0
        %776 = vmatpush1.msra.mxu0 0.0
        %777 = vmatprep.subr.mxu0 0.0
        %778 = vmatpush1.msra.mxu0 0.0
        %779 = vmatprep.subr.mxu0 0.0
        %780 = vmatpush1.msra.mxu0 0.0
        %781 = vmatprep.subr.mxu0 0.0
        %782 = vmatpush1.msra.mxu0 0.0
        %783 = vmatprep.subr.mxu0 0.0
        %784 = vmatpush1.msra.mxu0 0.0
        %785 = vmatprep.subr.mxu0 0.0
        %786 = vmatpush1.msra.mxu0 0.0
        %787 = vmatprep.subr.mxu0 0.0
        %788 = vmatpush1.msra.mxu0 0.0
        %789 = vmatprep.subr.mxu0 0.0
        %790 = vmatpush1.msra.mxu0 0.0
        %791 = vmatprep.subr.mxu0 0.0
        %792 = vmatpush1.msra.mxu0 0.0
        %793 = vmatprep.subr.mxu0 0.0
        %794 = vmatpush1.msra.mxu0 0.0
        %795 = vmatprep.subr.mxu0 0.0
        %796 = vmatpush1.msra.mxu0 0.0
        %797 = vmatprep.subr.mxu0 0.0
        %798 = vmatpush1.msra.mxu0 0.0
        %799 = vmatprep.subr.mxu0 0.0
        %800 = vmatpush1.msra.mxu0 0.0
        %801 = vmatprep.subr.mxu0 0.0
        %802 = vmatpush1.msra.mxu0 0.0
        %803 = vmatprep.subr.mxu0 0.0
        %804 = vmatpush1.msra.mxu0 0.0
        %805 = vmatprep.subr.mxu0 0.0
        %806 = vmatpush1.msra.mxu0 0.0
        %807 = vmatprep.subr.mxu0 0.0
        %808 = vmatpush1.msra.mxu0 0.0
        %809 = vmatprep.subr.mxu0 0.0
        %810 = vmatpush1.msra.mxu0 0.0
        %811 = vmatprep.subr.mxu0 0.0
        %812 = vmatpush1.msra.mxu0 0.0
        %813 = vmatprep.subr.mxu0 0.0
        %814 = vmatpush1.msra.mxu0 0.0
        %815 = vmatprep.subr.mxu0 0.0
        %816 = vmatpush1.msra.mxu0 0.0
        %817 = vmatprep.subr.mxu0 0.0
        %818 = vmatpush1.msra.mxu0 0.0
        %819 = vmatprep.subr.mxu0 0.0
        %820 = vmatpush1.msra.mxu0 0.0
        %821 = vmatprep.mubr.f32.mxu0 0.0
        %822 = vmatmul.mubr.f32.gmra.mrb[0].mxu0 %v755
        %v823 = vpop.f32.mrb[0].mxu0
        %v824 = vadd.f32 0.0, %v823
        %v825 = vpop.f32.mrb[0].mxu0
        %826 = vdwg.mxu0
        %v827 = vsel %vm289, %v318, -inf
        %828 = vmax.xlane.f32.xlu0 %v827
        %v829 = vpop.xlane.xlu0 %828
        %v830 = vsub.f32 %v318, %v829
        %v831 = vmul.f32 %v830, 1.442695
        %v832 = vpow.pop %v831
        %v833 = vsel %vm289, %v832, 0.0
        %834 = vadd.xlane.f32.xlu0 %v833
        %v835 = vpop.xlane.xlu0 %834
        %v836 = vrcp.pop %v835
        %v837 = vmul.f32 %v832, %v836
        %v838 = vlog2.pop %v835
        %v839 = vmul.f32 %v838, 0.6931472
        %v840 = vsub.f32 %v830, %v839
        %v841 = vsel %vm289, %v678, -inf
        %842 = vmax.xlane.f32.xlu0 %v841
        %v843 = vpop.xlane.xlu0 %842
        %v844 = vsub.f32 %v678, %v843
        %v845 = vmul.f32 %v844, 1.442695
        %v846 = vpow.pop %v845
        %v847 = vsel %vm289, %v846, 0.0
        %848 = vadd.xlane.f32.xlu0 %v847
        %v849 = vpop.xlane.xlu0 %848
        %v850 = vlog2.pop %v849
        %v851 = vmul.f32 %v850, 0.6931472
        %v852 = vsub.f32 %v844, %v851
        %v853 = vsel %vm289, %v751, -inf
        %854 = vmax.xlane.f32.xlu0 %v853
        %v855 = vpop.xlane.xlu0 %854
        %v856 = vsub.f32 %v751, %v855
        %v857 = vmul.f32 %v856, 1.442695
        %v858 = vpow.pop %v857
        %v859 = vsel %vm289, %v858, 0.0
        %860 = vadd.xlane.f32.xlu0 %v859
        %v861 = vpop.xlane.xlu0 %860
        %v862 = vrcp.pop %v861
        %v863 = vmul.f32 %v858, %v862
        %v864 = vlog2.pop %v861
        %v865 = vmul.f32 %v864, 0.6931472
        %v866 = vsub.f32 %v856, %v865
        %v867 = vsel %vm289, %v824, -inf
        %868 = vmax.xlane.f32.xlu0 %v867
        %v869 = vpop.xlane.xlu0 %868
        %v870 = vsub.f32 %v824, %v869
        %v871 = vmul.f32 %v870, 1.442695
        %v872 = vpow.pop %v871
        %v873 = vsel %vm289, %v872, 0.0
        %874 = vadd.xlane.f32.xlu0 %v873
        %v875 = vpop.xlane.xlu0 %874
        %v876 = vlog2.pop %v875
        %v877 = vmul.f32 %v876, 0.6931472
        %v878 = vsub.f32 %v870, %v877
        %v879 = vsub.f32 %v840, %v852
        %v880 = vmul.f32 %v837, %v879
        %v881 = vsel %vm289, %v880, 0.0
        %882 = vadd.xlane.f32.xlu0 %v881
        %v883 = vpop.xlane.xlu0 %882
        %v884 = vrot.slane %v883, 4
        %v885 = vadd.f32 %v883, %v884
        %v886 = vrot.slane %v885, 2
        %v887 = vadd.f32 %v885, %v886
        %v888 = vrot.slane %v887, 1
        %v889 = vadd.f32 %v887, %v888
        %s890 = vtos %v889
        %s891 = smul.f32 %s890, 0.1
        %v892 = vsub.f32 %v866, %v878
        %v893 = vmul.f32 %v863, %v892
        %v894 = vsel %vm289, %v893, 0.0
        %895 = vadd.xlane.f32.xlu0 %v894
        %v896 = vpop.xlane.xlu0 %895
        %v897 = vrot.slane %v896, 4
        %v898 = vadd.f32 %v896, %v897
        %v899 = vrot.slane %v898, 2
        %v900 = vadd.f32 %v898, %v899
        %v901 = vrot.slane %v900, 1
        %v902 = vadd.f32 %v900, %v901
        %s903 = vtos %v902
        %s904 = smul.f32 %s903, 0.5
        %s905 = sadd.f32 %s891, %s904
        %s906 = smul.f32 %s905, 0.125
        %v907 = vstv %s906
        %vm908 = vcmask 0
        %909 = vst.msk [vmem:[%s270] sm:$0x1] %vm908, %v907
        %s910 = sand.u32 %s102, 1
        %s911 = scalar_lea.sflag [#allocation4], %s910
        %s912 = sand.u32 %s102, 1
        %s913 = scalar_lea.vmem [#allocation7], %s912
        %s914 = sand.u32 %s28, 1
        %s915 = scalar_lea.sflag [#allocation9], %s914
        %s916 = sand.u32 %s130, 1
        %s917 = smul.addr %s916, 8
        %s918 = scalar_lea.vmem [#allocation8], %s917
        %s919 = sand.u32 %s28, 1
        %s920 = scalar_lea.sflag [#allocation9], %s919
        %s921 = sand.u32 %s158, 1
        %s922 = smul.addr %s921, 8
        %s923 = scalar_lea.vmem [#allocation10], %s922
        // Predicated region
        $region37: #{prediction_alignment_loss_batched.1} parent=27 // pred_check
          %p924 = pneg %p112
        $region38: #{prediction_alignment_loss_batched.1} parent=27 // pred_check_branch
          %926 = sbr.rel (%p924) target = $region40
        $region39: #{prediction_alignment_loss_batched.1} parent=27 // pred_region
          %s928 = ssub.s32 16, 16
          %929 = vsyncadd %s911, %s928
          %s930 = sadd.s32 %s33, %s32
          %s931 = smul.addr %s930, 16
          %s932 = scalar_lea.hbm %s2, %s931
          %s934 = sshll.u32 %s913, 4
          %s935 = int_to_ptr.vmem [resolvable:$true] %s934
          %937 = dma.vmem_to_hbm [thread:$0]  %s935, 16, %s932, %s911
        $region40: #{prediction_alignment_loss_batched.1} parent=27 // pred_fallthru
          _
        // Predicated region
        $region41: #{prediction_alignment_loss_batched.1} parent=27 // pred_check
          %p938 = pneg %p140
        $region42: #{prediction_alignment_loss_batched.1} parent=27 // pred_check_branch
          %940 = sbr.rel (%p938) target = $region44
        $region43: #{prediction_alignment_loss_batched.1} parent=27 // pred_region
          %s942 = ssub.s32 128, 128
          %943 = vsyncadd %s915, %s942
          %s944 = sadd.s32 %s33, %s32
          %s945 = smul.addr %s944, 128
          %s946 = scalar_lea.hbm %s3, %s945
          %s948 = sshll.u32 %s918, 4
          %s949 = int_to_ptr.vmem [resolvable:$true] %s948
          %951 = dma.vmem_to_hbm [thread:$0]  %s949, 128, %s946, %s915
        $region44: #{prediction_alignment_loss_batched.1} parent=27 // pred_fallthru
          _
        // Predicated region
        $region45: #{prediction_alignment_loss_batched.1} parent=27 // pred_check
          %p952 = pneg %p168
        $region46: #{prediction_alignment_loss_batched.1} parent=27 // pred_check_branch
          %954 = sbr.rel (%p952) target = $region48
        $region47: #{prediction_alignment_loss_batched.1} parent=27 // pred_region
          %s956 = ssub.s32 128, 128
          %957 = vsyncadd %s920, %s956
          %s958 = sadd.s32 %s33, %s32
          %s959 = smul.addr %s958, 128
          %s960 = scalar_lea.hbm %s4, %s959
          %s962 = sshll.u32 %s923, 4
          %s963 = int_to_ptr.vmem [resolvable:$true] %s962
          %965 = dma.vmem_to_hbm [thread:$0]  %s963, 128, %s960, %s920
        $region48: #{prediction_alignment_loss_batched.1} parent=27 // pred_fallthru
          _
      $region28: #{prediction_alignment_loss_batched.1} parent=5 // pred_fallthru
        _
      %p966 = scmp.le.s32.totalorder 2, %s23
      // Predicated region
      $region49: #{prediction_alignment_loss_batched.1} parent=5 // pred_check
        %p967 = pneg %p966
      $region50: #{prediction_alignment_loss_batched.1} parent=5 // pred_check_branch
        %969 = sbr.rel (%p967) target = $region52
      $region51: #{prediction_alignment_loss_batched.1} parent=5 // pred_region
        %s970 = ssub.s32 %s23, 2
        // Predicated region
        $region53: #{prediction_alignment_loss_batched.1} parent=51 // pred_check
          %p971 = pneg %p118
        $region54: #{prediction_alignment_loss_batched.1} parent=51 // pred_check_branch
          %973 = sbr.rel (%p971) target = $region56
        $region55: #{prediction_alignment_loss_batched.1} parent=51 // pred_region
          %s974 = sand.u32 %s103, 1
          %s975 = scalar_lea.sflag [#allocation4], %s974
          %s976 = sand.u32 %s103, 1
          %s977 = scalar_lea.vmem [#allocation7], %s976
          %978 = dma.done %s975, 16
        $region56: #{prediction_alignment_loss_batched.1} parent=51 // pred_fallthru
          _
        // Predicated region
        $region57: #{prediction_alignment_loss_batched.1} parent=51 // pred_check
          %p979 = pneg %p146
        $region58: #{prediction_alignment_loss_batched.1} parent=51 // pred_check_branch
          %981 = sbr.rel (%p979) target = $region60
        $region59: #{prediction_alignment_loss_batched.1} parent=51 // pred_region
          %s982 = sand.u32 %s29, 1
          %s983 = scalar_lea.sflag [#allocation9], %s982
          %s984 = sand.u32 %s131, 1
          %s985 = smul.addr %s984, 8
          %s986 = scalar_lea.vmem [#allocation8], %s985
          %987 = dma.done %s983, 128
        $region60: #{prediction_alignment_loss_batched.1} parent=51 // pred_fallthru
          _
        // Predicated region
        $region61: #{prediction_alignment_loss_batched.1} parent=51 // pred_check
          %p988 = pneg %p174
        $region62: #{prediction_alignment_loss_batched.1} parent=51 // pred_check_branch
          %990 = sbr.rel (%p988) target = $region64
        $region63: #{prediction_alignment_loss_batched.1} parent=51 // pred_region
          %s991 = sand.u32 %s29, 1
          %s992 = scalar_lea.sflag [#allocation9], %s991
          %s993 = sand.u32 %s159, 1
          %s994 = smul.addr %s993, 8
          %s995 = scalar_lea.vmem [#allocation10], %s994
          %996 = dma.done %s992, 128
        $region64: #{prediction_alignment_loss_batched.1} parent=51 // pred_fallthru
          _
      $region52: #{prediction_alignment_loss_batched.1} parent=5 // pred_fallthru
        _
    $region6: #{prediction_alignment_loss_batched.1} parent=1 // loop_footer
      %s27 = sadd.s32 1, %s23
    $region7: #{prediction_alignment_loss_batched.1} parent=1 // loop_footer_branch
      %22 = sbr.rel target = $region3
    $region8: #{prediction_alignment_loss_batched.1} parent=1 // loop_exit
      _
    %997 = vsyncpa [#allocation3], 1
    %s998 = scalar_lea.sflag [#allocation3], 1
    %999 = vsyncpa %s998, 1
    %1000 = vsyncpa [#allocation6], 1
    %s1001 = scalar_lea.sflag [#allocation6], 1
    %1002 = vsyncpa %s1001, 1
    %1003 = vsyncpa [#allocation4], 1
    %s1004 = scalar_lea.sflag [#allocation4], 1
    %1005 = vsyncpa %s1004, 1
    %1006 = vsyncpa [#allocation9], 1
    %s1007 = scalar_lea.sflag [#allocation9], 1
    %1008 = vsyncpa %s1007, 1

</llo_original>
